<compile_context>
chip_gen: v7x
topology: tpu7x:2x2x1
jax: 0.10.0
libtpu: 0.0.40
codegen_flags: <defaults>
</compile_context>

<pallas_src>
import jax
import jax.numpy as jnp
from jax import lax
from jax.experimental import pallas as pl
from jax.experimental.pallas import tpu as pltpu


def _linear_kernel(x_ref, w_ref, b_ref, o_ref):
    # x_ref: (TB, F), w_ref: (C, F) (PyTorch layout), b_ref: (1, C), o_ref: (TB, C)
    # Contract x's F axis (1) with w's F axis (1): result is (TB, C) == x @ W.T.
    acc = lax.dot_general(
        x_ref[...], w_ref[...],
        dimension_numbers=(((1,), (1,)), ((), ())),
        preferred_element_type=jnp.float32,
    )
    o_ref[...] = (acc + b_ref[...]).astype(o_ref.dtype)


def logistic_regression_multi(x, weight, bias, *, block_batch=1024):
    """Forward of nn.Linear: y = x @ weight.T + bias.

    x:      (B, in_features)             float32
    weight: (num_classes, in_features)   float32 (PyTorch convention, NOT transposed)
    bias:   (num_classes,)               float32
    returns (B, num_classes)             float32
    """
    B, F = x.shape
    C, Fw = weight.shape
    assert F == Fw, "weight shape must be (num_classes, in_features)"
    b2 = bias.reshape(1, C)

    # Batch tile: big enough (512+) to hide per-step overhead, multiple of 8 for
    # sublane alignment. If the whole batch fits in one tile, use a single block
    # (block dim == full array dim is always legal regardless of alignment).
    if B <= block_batch:
        TB = B
    else:
        TB = (block_batch // 8) * 8
        TB = max(TB, 8)
    grid = (pl.cdiv(B, TB),)

    # VMEM budget: double-buffered x (2*TB*F*4) + double-buffered out (2*TB*C*4)
    # + resident W (C*F*4) + b. For typical linear heads this is well under even
    # v5e's 16 MiB scoped default, so we leave vmem_limit_bytes alone.
    # TODO(synk): output is lane-sparse (C < 128 -> masked vst); padding C to 128
    # or fusing the downstream softmax/argmax would avoid the narrow HBM write,
    # but the module's forward contract is (B, num_classes) so we keep it.

    return pl.pallas_call(
        _linear_kernel,
        out_shape=jax.ShapeDtypeStruct((B, C), x.dtype),
        grid=grid,
        in_specs=[
            pl.BlockSpec((TB, F), lambda i: (i, 0)),   # streamed per batch tile
            pl.BlockSpec((C, F), lambda i: (0, 0)),    # weight: resident
            pl.BlockSpec((1, C), lambda i: (0, 0)),    # bias:   resident
        ],
        out_specs=pl.BlockSpec((TB, C), lambda i: (i, 0)),
        compiler_params=pltpu.CompilerParams(
            dimension_semantics=("parallel",),
        ),
    )(x, weight, b2)


if __name__ == "__main__":
    # Small, deterministic setup consistent with the module's forward:
    # LogisticRegressionMulti(in_features=32, num_classes=10) on a batch of
    # flat feature vectors.
    in_features, num_classes = 32, 10

    key = jax.random.PRNGKey(0)
    kx, kw, kb, kx2 = jax.random.split(key, 4)

    # Deterministic param init mirroring nn.Linear's uniform(-1/sqrt(F), 1/sqrt(F)).
    bound = 1.0 / (in_features ** 0.5)
    weight = jax.random.uniform(
        kw, (num_classes, in_features), minval=-bound, maxval=bound,
        dtype=jnp.float32)
    bias = jax.random.uniform(
        kb, (num_classes,), minval=-bound, maxval=bound, dtype=jnp.float32)

    # Case 1: tiny batch -> single block path (TB == B).
    batch = 8
    x = jax.random.normal(kx, (batch, in_features), dtype=jnp.float32)
    out = jax.block_until_ready(logistic_regression_multi(x, weight, bias))
    ref = x @ weight.T + bias
    assert out.shape == (batch, num_classes)
    assert jnp.allclose(out, ref, atol=1e-5, rtol=1e-5)

    # Case 2: exercise the tiled/pipelined path (grid > 1, batch axis "parallel").
    batch2 = 24
    x2 = jax.random.normal(kx2, (batch2, in_features), dtype=jnp.float32)
    out2 = jax.block_until_ready(
        logistic_regression_multi(x2, weight, bias, block_batch=8))
    ref2 = x2 @ weight.T + bias
    assert out2.shape == (batch2, num_classes)
    assert jnp.allclose(out2, ref2, atol=1e-5, rtol=1e-5)

    print("KERNEL_OK")
</pallas_src>

<mosaic_0001>
module attributes {stable_mosaic.version = 11 : i64} {
  func.func @_linear_kernel(%arg0: i32, %arg1: memref<8x32xf32, #tpu.memory_space<vmem>>, %arg2: memref<10x32xf32, #tpu.memory_space<vmem>>, %arg3: memref<1x10xf32, #tpu.memory_space<vmem>>, %arg4: memref<8x10xf32, #tpu.memory_space<vmem>>) attributes {dimension_semantics = [#tpu.dimension_semantics<parallel>], iteration_bounds = array<i64: 1>, scalar_prefetch = 0 : i64, scratch_operands = 0 : i64, tpu.core_type = #tpu.core_type<tc>, window_params = [{transform_indices = @transform_0, window_bounds = array<i64: 8, 32>}, {pipeline_mode = #tpu.pipeline_mode<synchronous>, transform_indices = @transform_1, window_bounds = array<i64: 10, 32>}, {pipeline_mode = #tpu.pipeline_mode<synchronous>, transform_indices = @transform_2, window_bounds = array<i64: 1, 10>}, {transform_indices = @transform_3, window_bounds = array<i64: 8, 10>}]} {
    %c0 = arith.constant 0 : index
    %c0_0 = arith.constant 0 : index
    %0 = vector.load %arg1[%c0, %c0_0] : memref<8x32xf32, #tpu.memory_space<vmem>>, vector<8x32xf32>
    %c0_1 = arith.constant 0 : index
    %c0_2 = arith.constant 0 : index
    %1 = vector.load %arg2[%c0_1, %c0_2] : memref<10x32xf32, #tpu.memory_space<vmem>>, vector<10x32xf32>
    %cst = arith.constant dense<0.000000e+00> : vector<8x10xf32>
    %2 = tpu.matmul %0, %1, %cst {dimension_numbers = #tpu.dot_dimension_numbers<[1], [1], [0], [0], [0, 0, 1, 0], [], []>} : vector<8x32xf32>, vector<10x32xf32>, vector<8x10xf32> -> vector<8x10xf32>
    %c0_3 = arith.constant 0 : index
    %c0_4 = arith.constant 0 : index
    %3 = vector.load %arg3[%c0_3, %c0_4] : memref<1x10xf32, #tpu.memory_space<vmem>>, vector<1x10xf32>
    %4 = vector.broadcast %3 : vector<1x10xf32> to vector<8x10xf32>
    %5 = arith.addf %2, %4 : vector<8x10xf32>
    %c0_5 = arith.constant 0 : index
    %c0_6 = arith.constant 0 : index
    %6 = vector.load %arg4[%c0_5, %c0_6] : memref<8x10xf32, #tpu.memory_space<vmem>>, vector<8x10xf32>
    tpu.vector_store %arg4[%c0_5, %c0_6], %5 {strides = array<i32>} : memref<8x10xf32, #tpu.memory_space<vmem>>, vector<8x10xf32>,
    return
  }
  func.func @transform_0(%arg0: i32) -> (i32, i32) {
    %c0_i32 = arith.constant 0 : i32
    %c0_i32_0 = arith.constant 0 : i32
    return %arg0, %c0_i32 : i32, i32
  }
  func.func @transform_1(%arg0: i32) -> (i32, i32) {
    %c0_i32 = arith.constant 0 : i32
    %c0_i32_0 = arith.constant 0 : i32
    %c0_i32_1 = arith.constant 0 : i32
    return %c0_i32, %c0_i32_0 : i32, i32
  }
  func.func @transform_2(%arg0: i32) -> (i32, i32) {
    %c0_i32 = arith.constant 0 : i32
    %c0_i32_0 = arith.constant 0 : i32
    %c0_i32_1 = arith.constant 0 : i32
    return %c0_i32, %c0_i32_0 : i32, i32
  }
  func.func @transform_3(%arg0: i32) -> (i32, i32) {
    %c0_i32 = arith.constant 0 : i32
    %c0_i32_0 = arith.constant 0 : i32
    return %arg0, %c0_i32 : i32, i32
  }
}

</mosaic_0001>

<llo_original>
// kernel: tpu_custom_call.1
$region0: #{tpu_custom_call.1}
  #allocation0 [shape = 'u32[]', space=smem, size = 0x4, offset = 0x4, fixed_abs, tag = 'smem constant byte address 0x4 - core index']
  #allocation1 [shape = 'u32[144,128]{1,0:T(1,128)}', space=vmem, size = 0x12000, scoped, tag = 'internal scratch']
  %s0 = inlined_call_operand.hbm [shape: f32[8,32], index: 0, kind: input, shape index: {}]
  %s1 = inlined_call_operand.hbm [shape: f32[10,32], index: 1, kind: input, shape index: {}]
  %s2 = inlined_call_operand.vmem [shape: f32[1,10], index: 2, kind: input, shape index: {}]
  %s3 = inlined_call_operand.hbm [shape: f32[8,10], index: 3, kind: output, shape index: {}]
  %s4 = sld [smem:[#allocation0]]
  $region30: #{tpu_custom_call.1} parent=0
    _
  %s6 = ssub.s32 1, %s4
  %s7 = scalar_select 0, %s6, %s4
  $region1: #{tpu_custom_call.1} parent=0
    #allocation2 [shape = 'u8[4096]{0}', space=vmem, size = 0x1000, scoped, tag = 'input window, operand 0, single buffered']
    #allocation3 [shape = 's32[1]{0}', space=sflag, size = 0x4, scoped, tag = 'scoped memory for tpu_custom_call.1']
    #allocation4 [shape = 's32[1]{0}', space=sflag, size = 0x4, scoped, tag = 'scoped memory for tpu_custom_call.1']
    #allocation5 [shape = 'u8[8192]{0}', space=vmem, size = 0x2000, scoped, tag = 'input window, operand 1, single buffered']
    #allocation6 [shape = 's32[1]{0}', space=sflag, size = 0x4, scoped, tag = 'scoped memory for tpu_custom_call.1']
    #allocation7 [shape = 'u8[4096]{0}', space=vmem, size = 0x1000, scoped, tag = 'output window, operand 0, single buffered']
    %8 = vsyncpa [#allocation3], 0
    %9 = vsyncpa [#allocation6], 0
    %10 = vsyncpa [#allocation4], 0
    // Predicated region
    $region2: #{tpu_custom_call.1} parent=1 // pred_check
      _
    $region3: #{tpu_custom_call.1} parent=1 // pred_check_branch
      %12 = sbr.rel (0) target = $region5
    $region4: #{tpu_custom_call.1} parent=1 // pred_region
      %s14 = ssub.s32 128, 128
      %15 = vsyncadd [#allocation3], %s14
      %s17 = sshll.u32 [#allocation2], 4
      %s18 = int_to_ptr.vmem [resolvable:$true] %s17
      %20 = dma.hbm_to_vmem [thread:$0]  %s0, 128, %s18, [#allocation3]
    $region5: #{tpu_custom_call.1} parent=1 // pred_fallthru
      _
    // Predicated region
    $region6: #{tpu_custom_call.1} parent=1 // pred_check
      _
    $region7: #{tpu_custom_call.1} parent=1 // pred_check_branch
      %22 = sbr.rel (0) target = $region9
    $region8: #{tpu_custom_call.1} parent=1 // pred_region
      %s24 = ssub.s32 256, 256
      %25 = vsyncadd [#allocation6], %s24
      %s26 = sshll.u32 [#allocation5], 4
      %s27 = int_to_ptr.vmem [resolvable:$true] %s26
      %32 = dma.hbm_to_vmem [thread:$0]  %s1, 256, %s27, [#allocation6], 128, 128, 8
    $region9: #{tpu_custom_call.1} parent=1 // pred_fallthru
      _
    // Predicated region
    $region10: #{tpu_custom_call.1} parent=1 // pred_check
      _
    $region11: #{tpu_custom_call.1} parent=1 // pred_check_branch
      %34 = sbr.rel (0) target = $region13
    $region12: #{tpu_custom_call.1} parent=1 // pred_region
      _
    $region13: #{tpu_custom_call.1} parent=1 // pred_fallthru
      _
    // Predicated region
    $region14: #{tpu_custom_call.1} parent=1 // pred_check
      _
    $region15: #{tpu_custom_call.1} parent=1 // pred_check_branch
      %36 = sbr.rel (0) target = $region17
    $region16: #{tpu_custom_call.1} parent=1 // pred_region
      %37 = dma.done [#allocation3], 128
    $region17: #{tpu_custom_call.1} parent=1 // pred_fallthru
      _
    // Predicated region
    $region18: #{tpu_custom_call.1} parent=1 // pred_check
      _
    $region19: #{tpu_custom_call.1} parent=1 // pred_check_branch
      %39 = sbr.rel (0) target = $region21
    $region20: #{tpu_custom_call.1} parent=1 // pred_region
      %40 = dma.done [#allocation6], 256
    $region21: #{tpu_custom_call.1} parent=1 // pred_fallthru
      _
    %v41 = vld [vmem:[#allocation2] sm:$0xff]
    %v42 = vld [vmem:[#allocation5] sm:$0xff]
    %v43 = vld [vmem:[#allocation5 + $0x8] sm:$0x3]
    %v44 = vld [vmem:[%s2] sm:$0x1]
    %v46 = vlaneseq
    %v47 = vshrl.u32 %v46, 7
    %v48 = vsub.s32 0, %v47
    %v49 = vrot.slane %v44, %v48
    %vm51 = vcmask 261120
    %v53 = vsel %vm51, %v41, 0
    %v56 = vsel %vm51, %v42, 0
    %v59 = vsel %vm51, %v43, 0
    %61 = vmatprep.subr.mxu0 0.0
    %62 = vmatpush1.xpose.msra.mxu0 %v56
    %63 = vmatprep.subr.mxu0 0.0
    %64 = vmatpush1.xpose.msra.mxu0 %v59
    %65 = vmatprep.subr.mxu0 0.0
    %66 = vmatpush1.xpose.msra.mxu0 0.0
    %67 = vmatprep.subr.mxu0 0.0
    %68 = vmatpush1.xpose.msra.mxu0 0.0
    %69 = vmatprep.subr.mxu0 0.0
    %70 = vmatpush1.xpose.msra.mxu0 0.0
    %71 = vmatprep.subr.mxu0 0.0
    %72 = vmatpush1.xpose.msra.mxu0 0.0
    %73 = vmatprep.subr.mxu0 0.0
    %74 = vmatpush1.xpose.msra.mxu0 0.0
    %75 = vmatprep.subr.mxu0 0.0
    %76 = vmatpush1.xpose.msra.mxu0 0.0
    %77 = vmatprep.subr.mxu0 0.0
    %78 = vmatpush1.xpose.msra.mxu0 0.0
    %79 = vmatprep.subr.mxu0 0.0
    %80 = vmatpush1.xpose.msra.mxu0 0.0
    %81 = vmatprep.subr.mxu0 0.0
    %82 = vmatpush1.xpose.msra.mxu0 0.0
    %83 = vmatprep.subr.mxu0 0.0
    %84 = vmatpush1.xpose.msra.mxu0 0.0
    %85 = vmatprep.subr.mxu0 0.0
    %86 = vmatpush1.xpose.msra.mxu0 0.0
    %87 = vmatprep.subr.mxu0 0.0
    %88 = vmatpush1.xpose.msra.mxu0 0.0
    %89 = vmatprep.subr.mxu0 0.0
    %90 = vmatpush1.xpose.msra.mxu0 0.0
    %91 = vmatprep.subr.mxu0 0.0
    %92 = vmatpush1.xpose.msra.mxu0 0.0
    %93 = vmatprep.subr.mxu0 0.0
    %94 = vmatpush1.xpose.msra.mxu0 0.0
    %95 = vmatprep.subr.mxu0 0.0
    %96 = vmatpush1.xpose.msra.mxu0 0.0
    %97 = vmatprep.subr.mxu0 0.0
    %98 = vmatpush1.xpose.msra.mxu0 0.0
    %99 = vmatprep.subr.mxu0 0.0
    %100 = vmatpush1.xpose.msra.mxu0 0.0
    %101 = vmatprep.subr.mxu0 0.0
    %102 = vmatpush1.xpose.msra.mxu0 0.0
    %103 = vmatprep.subr.mxu0 0.0
    %104 = vmatpush1.xpose.msra.mxu0 0.0
    %105 = vmatprep.subr.mxu0 0.0
    %106 = vmatpush1.xpose.msra.mxu0 0.0
    %107 = vmatprep.subr.mxu0 0.0
    %108 = vmatpush1.xpose.msra.mxu0 0.0
    %109 = vmatprep.subr.mxu0 0.0
    %110 = vmatpush1.xpose.msra.mxu0 0.0
    %111 = vmatprep.subr.mxu0 0.0
    %112 = vmatpush1.xpose.msra.mxu0 0.0
    %113 = vmatprep.subr.mxu0 0.0
    %114 = vmatpush1.xpose.msra.mxu0 0.0
    %115 = vmatprep.subr.mxu0 0.0
    %116 = vmatpush1.xpose.msra.mxu0 0.0
    %117 = vmatprep.subr.mxu0 0.0
    %118 = vmatpush1.xpose.msra.mxu0 0.0
    %119 = vmatprep.subr.mxu0 0.0
    %120 = vmatpush1.xpose.msra.mxu0 0.0
    %121 = vmatprep.subr.mxu0 0.0
    %122 = vmatpush1.xpose.msra.mxu0 0.0
    %123 = vmatprep.subr.mxu0 0.0
    %124 = vmatpush1.xpose.msra.mxu0 0.0
    %125 = vmatprep.mubr.f32.mxu0 0.0
    %126 = vmatmul.mubr.f32.gmra.mrb[0].mxu0 %v53
    %v127 = vpop.f32.mrb[0].mxu0
    %v128 = vadd.f32 %v49, %v127
    %v129 = vpop.f32.mrb[0].mxu0
    %130 = vdwg.mxu0
    %vm131 = vcmask 80896
    %132 = vst.msk [vmem:[#allocation7] sm:$0xff] %vm131, %v128
    // Predicated region
    $region22: #{tpu_custom_call.1} parent=1 // pred_check
      _
    $region23: #{tpu_custom_call.1} parent=1 // pred_check_branch
      %134 = sbr.rel (0) target = $region25
    $region24: #{tpu_custom_call.1} parent=1 // pred_region
      %s136 = ssub.s32 128, 128
      %137 = vsyncadd [#allocation4], %s136
      %s139 = sshll.u32 [#allocation7], 4
      %s140 = int_to_ptr.vmem [resolvable:$true] %s139
      %142 = dma.vmem_to_hbm [thread:$0]  %s140, 128, %s3, [#allocation4]
    $region25: #{tpu_custom_call.1} parent=1 // pred_fallthru
      _
    // Predicated region
    $region26: #{tpu_custom_call.1} parent=1 // pred_check
      _
    $region27: #{tpu_custom_call.1} parent=1 // pred_check_branch
      %144 = sbr.rel (0) target = $region29
    $region28: #{tpu_custom_call.1} parent=1 // pred_region
      %145 = dma.done [#allocation4], 128
    $region29: #{tpu_custom_call.1} parent=1 // pred_fallthru
      _
    %146 = vsyncpa [#allocation3], 1
    %147 = vsyncpa [#allocation6], 1
    %148 = vsyncpa [#allocation4], 1

</llo_original>
